<compile_context>
chip_gen: v7x
topology: tpu7x:2x2x1
jax: 0.10.0
libtpu: 0.0.40
codegen_flags: <defaults>
</compile_context>

<pallas_src>
import functools

import jax
import jax.numpy as jnp
from jax.experimental import pallas as pl
from jax.experimental.pallas import tpu as pltpu


# ------------------------------- kernel ------------------------------------ #

def _dr_kernel(x_ref, w_ref, shift_ref, o_ref, *, use_mxu, precision):
    """One (n, spatial-tile) step: (scaled) conv1x1 + BN shift + ReLU.

    x_ref:     (Cin,  TS)   input pixels, spatial on lanes (native dtype)
    w_ref:     (Cout, Cin)  1x1 conv weight with BN scale folded in
    shift_ref: (Cout, 1)    beta - mean * scale                      (f32)
    o_ref:     (Cout, TS)   output pixels
    """
    if use_mxu:
        # Native-dtype operands straight into the MXU, f32 accumulation.
        y = jnp.dot(w_ref[...], x_ref[...],
                    preferred_element_type=jnp.float32,
                    precision=precision)
    else:
        # Tiny contraction dim: VPU broadcast-FMA with independent partial
        # products, tree-summed (no serial accumulation chain).
        w = w_ref[...].astype(jnp.float32)
        x = x_ref[...].astype(jnp.float32)
        cin = x.shape[0]
        parts = [w[:, c:c + 1] * x[c:c + 1, :] for c in range(cin)]
        while len(parts) > 1:
            nxt = [parts[i] + parts[i + 1] for i in range(0, len(parts) - 1, 2)]
            if len(parts) % 2:
                nxt.append(parts[-1])
            parts = nxt
        y = parts[0]

    y = y + shift_ref[...]                                   # BN (eval) shift
    o_ref[...] = jnp.maximum(y, 0.0).astype(o_ref.dtype)     # ReLU


# ------------------------------- tiling ------------------------------------ #

def _vmem_budget():
    """(tile-buffer budget bytes, vmem_limit_bytes or None) per TPU generation."""
    try:
        kind = jax.devices()[0].device_kind.lower()
    except Exception:  # pragma: no cover - non-TPU fallback
        kind = ""
    if "v7" in kind:                       # 64 MiB physical / 32 MiB scoped
        return 24 * 1024 * 1024, 32 * 1024 * 1024
    if "v6" in kind:                       # 128 MiB physical, plenty of room
        return 48 * 1024 * 1024, 64 * 1024 * 1024
    if "v5" in kind:                       # v5e: 16 MiB default scoped VMEM
        return 12 * 1024 * 1024, 16 * 1024 * 1024
    return 12 * 1024 * 1024, None          # unknown: stay conservative


def _spatial_tile(hw, cin, cout, x_bytes, out_bytes, budget):
    """Lane-dense spatial tile: multiple of 128 sized to the VMEM budget."""
    if hw <= 128:
        return hw                           # full extent (always legal)
    # Double-buffered input + output columns per spatial element.
    per_col = 2 * (cin * x_bytes + cout * out_bytes)
    # Reserve room for the (tiny) weight/shift buffers + misc headroom.
    reserved = 2 * (cout * cin * x_bytes + cout * 4) + (1 << 20)
    avail = max(budget - reserved, per_col * 128)
    ts = (avail // per_col // 128) * 128
    ts = max(128, min(ts, 8192))            # amortize grid-step overhead
    ts = min(ts, (hw // 128) * 128)         # never exceed the (padded) extent
    return ts


# ------------------------------- wrapper ------------------------------------ #

@jax.jit
def dr_forward(x, conv_weight, bn_gamma, bn_beta, bn_mean, bn_var,
               eps=1e-5, precision=None):
    """Mirrors DR(in_d, out_d)(x) in eval mode.

    x:            (N, Cin, H, W)      f32 or bf16 (output matches x.dtype)
    conv_weight:  (Cout, Cin, 1, 1)   (no bias)
    bn_*:         (Cout,)             BatchNorm2d weight/bias/running stats
    precision:    optional lax.Precision for the MXU dot (f32 parity).
    """
    n, cin, h, w = x.shape
    cout = conv_weight.shape[0]
    hw = h * w

    # Fold BN(eval) into the conv weight (per-output-channel scale) + shift.
    scale = (bn_gamma.astype(jnp.float32)
             / jnp.sqrt(bn_var.astype(jnp.float32) + eps))
    shift = bn_beta.astype(jnp.float32) - bn_mean.astype(jnp.float32) * scale
    w2d = conv_weight.reshape(cout, cin).astype(jnp.float32)
    w_scaled = (w2d * scale[:, None]).astype(x.dtype)   # native operand dtype

    x3 = x.reshape(n, cin, hw)              # free reshape, no transpose

    budget, vmem_limit = _vmem_budget()
    ts = _spatial_tile(hw, cin, cout, x.dtype.itemsize, x.dtype.itemsize,
                       budget)
    # Guarantee >=2 grid steps along a parallel axis so multi-TC chips (v7x)
    # keep both cores busy.
    if n * pl.cdiv(hw, ts) == 1 and ts >= 256:
        ts = max(128, (ts // 2 // 128) * 128)
    grid = (n, pl.cdiv(hw, ts))

    use_mxu = cin >= 8

    cp_kwargs = dict(dimension_semantics=("parallel", "parallel"))
    if vmem_limit is not None:
        cp_kwargs["vmem_limit_bytes"] = vmem_limit

    out3 = pl.pallas_call(
        functools.partial(_dr_kernel, use_mxu=use_mxu, precision=precision),
        out_shape=jax.ShapeDtypeStruct((n, cout, hw), x.dtype),
        grid=grid,
        in_specs=[
            pl.BlockSpec((None, cin, ts), lambda b, s: (b, 0, s)),   # x tile
            pl.BlockSpec((cout, cin), lambda b, s: (0, 0)),          # weight
            pl.BlockSpec((cout, 1), lambda b, s: (0, 0)),            # shift
        ],
        out_specs=pl.BlockSpec((None, cout, ts), lambda b, s: (b, 0, s)),
        compiler_params=pltpu.CompilerParams(**cp_kwargs),
    )(x3, w_scaled, shift.reshape(cout, 1))

    return out3.reshape(n, cout, h, w)


# --------------------------------- main ------------------------------------- #

if __name__ == "__main__":
    import numpy as np

    eps = 1e-5

    def ref_np(x, w, gamma, beta, mean, var):
        xn = np.asarray(x, np.float32)
        wn = np.asarray(w, np.float32).reshape(w.shape[0], w.shape[1])
        conv = np.einsum("oc,nchw->nohw", wn, xn)
        bn = ((conv - np.asarray(mean, np.float32)[None, :, None, None])
              / np.sqrt(np.asarray(var, np.float32)[None, :, None, None] + eps)
              * np.asarray(gamma, np.float32)[None, :, None, None]
              + np.asarray(beta, np.float32)[None, :, None, None])
        return np.maximum(bn, 0.0)

    key = jax.random.PRNGKey(0)
    k1, k2, k3, k4, k5, k6, k7, k8 = jax.random.split(key, 8)

    # ---- Test 1: f32, tiny Cin (VPU fallback path), tight tolerance -------- #
    N, Cin, H, W = 2, 4, 16, 16
    Cout = 8

    def q(a):  # bf16-representable values so any MXU pass is exact-ish
        return a.astype(jnp.bfloat16).astype(jnp.float32)

    x = q(jax.random.normal(k1, (N, Cin, H, W), jnp.float32))
    conv_w = q(jax.random.normal(k2, (Cout, Cin, 1, 1), jnp.float32))
    gamma = q(jax.random.uniform(k3, (Cout,), jnp.float32, 0.5, 1.5))
    beta = q(jax.random.normal(k4, (Cout,), jnp.float32) * 0.1)
    run_mean = q(jax.random.normal(k5, (Cout,), jnp.float32) * 0.1)
    run_var = q(jax.random.uniform(k6, (Cout,), jnp.float32, 0.5, 1.5))

    y = dr_forward(x, conv_w, gamma, beta, run_mean, run_var, eps)
    jax.block_until_ready(y)
    assert y.shape == (N, Cout, H, W)
    np.testing.assert_allclose(
        np.asarray(y), ref_np(x, conv_w, gamma, beta, run_mean, run_var),
        atol=1e-4, rtol=1e-4)

    # ---- Test 2: bf16 end-to-end, larger Cin (MXU path), bf16 tolerance ---- #
    N2, Cin2, Cout2 = 2, 32, 16
    xb = jax.random.normal(k7, (N2, Cin2, H, W), jnp.float32).astype(jnp.bfloat16)
    wb = (jax.random.normal(k8, (Cout2, Cin2, 1, 1), jnp.float32) * 0.3
          ).astype(jnp.bfloat16)
    gamma2 = jax.random.uniform(k3, (Cout2,), jnp.float32, 0.5, 1.5)
    beta2 = jax.random.normal(k4, (Cout2,), jnp.float32) * 0.1
    mean2 = jax.random.normal(k5, (Cout2,), jnp.float32) * 0.1
    var2 = jax.random.uniform(k6, (Cout2,), jnp.float32, 0.5, 1.5)

    y2 = dr_forward(xb, wb, gamma2, beta2, mean2, var2, eps)
    jax.block_until_ready(y2)
    assert y2.shape == (N2, Cout2, H, W) and y2.dtype == jnp.bfloat16
    np.testing.assert_allclose(
        np.asarray(y2, np.float32), ref_np(xb, wb, gamma2, beta2, mean2, var2),
        atol=5e-2, rtol=3e-2)

    print("KERNEL_OK")
</pallas_src>

<mosaic_0001>
module attributes {stable_mosaic.version = 11 : i64} {
  func.func @_dr_kernel(%arg0: i32, %arg1: i32, %arg2: memref<1x4x256xf32, #tpu.memory_space<vmem>>, %arg3: memref<8x4xf32, #tpu.memory_space<vmem>>, %arg4: memref<8x1xf32, #tpu.memory_space<vmem>>, %arg5: memref<1x8x256xf32, #tpu.memory_space<vmem>>) attributes {dimension_semantics = [#tpu.dimension_semantics<parallel>, #tpu.dimension_semantics<parallel>], iteration_bounds = array<i64: 2, 1>, scalar_prefetch = 0 : i64, scratch_operands = 0 : i64, tpu.core_type = #tpu.core_type<tc>, window_params = [{transform_indices = @transform_0, window_bounds = array<i64: 1, 4, 256>}, {pipeline_mode = #tpu.pipeline_mode<synchronous>, transform_indices = @transform_1, window_bounds = array<i64: 8, 4>}, {pipeline_mode = #tpu.pipeline_mode<synchronous>, transform_indices = @transform_2, window_bounds = array<i64: 8, 1>}, {transform_indices = @transform_3, window_bounds = array<i64: 1, 8, 256>}]} {
    %c0 = arith.constant 0 : index
    %c0_0 = arith.constant 0 : index
    %0 = vector.load %arg3[%c0, %c0_0] : memref<8x4xf32, #tpu.memory_space<vmem>>, vector<8x4xf32>
    %c0_1 = arith.constant 0 : index
    %c0_2 = arith.constant 0 : index
    %c0_3 = arith.constant 0 : index
    %1 = vector.load %arg2[%c0_1, %c0_2, %c0_3] : memref<1x4x256xf32, #tpu.memory_space<vmem>>, vector<1x4x256xf32>
    %2 = vector.shape_cast %1 : vector<1x4x256xf32> to vector<4x256xf32>
    %3 = vector.extract_strided_slice %0 {offsets = [0, 0], sizes = [8, 1], strides = [1, 1]} : vector<8x4xf32> to vector<8x1xf32>
    %4 = vector.extract_strided_slice %2 {offsets = [0, 0], sizes = [1, 256], strides = [1, 1]} : vector<4x256xf32> to vector<1x256xf32>
    %5 = vector.broadcast %3 : vector<8x1xf32> to vector<8x256xf32>
    %6 = vector.broadcast %4 : vector<1x256xf32> to vector<8x256xf32>
    %7 = arith.mulf %5, %6 : vector<8x256xf32>
    %8 = vector.extract_strided_slice %0 {offsets = [0, 1], sizes = [8, 1], strides = [1, 1]} : vector<8x4xf32> to vector<8x1xf32>
    %9 = vector.extract_strided_slice %2 {offsets = [1, 0], sizes = [1, 256], strides = [1, 1]} : vector<4x256xf32> to vector<1x256xf32>
    %10 = vector.broadcast %8 : vector<8x1xf32> to vector<8x256xf32>
    %11 = vector.broadcast %9 : vector<1x256xf32> to vector<8x256xf32>
    %12 = arith.mulf %10, %11 : vector<8x256xf32>
    %13 = vector.extract_strided_slice %0 {offsets = [0, 2], sizes = [8, 1], strides = [1, 1]} : vector<8x4xf32> to vector<8x1xf32>
    %14 = vector.extract_strided_slice %2 {offsets = [2, 0], sizes = [1, 256], strides = [1, 1]} : vector<4x256xf32> to vector<1x256xf32>
    %15 = vector.broadcast %13 : vector<8x1xf32> to vector<8x256xf32>
    %16 = vector.broadcast %14 : vector<1x256xf32> to vector<8x256xf32>
    %17 = arith.mulf %15, %16 : vector<8x256xf32>
    %18 = vector.extract_strided_slice %0 {offsets = [0, 3], sizes = [8, 1], strides = [1, 1]} : vector<8x4xf32> to vector<8x1xf32>
    %19 = vector.extract_strided_slice %2 {offsets = [3, 0], sizes = [1, 256], strides = [1, 1]} : vector<4x256xf32> to vector<1x256xf32>
    %20 = vector.broadcast %18 : vector<8x1xf32> to vector<8x256xf32>
    %21 = vector.broadcast %19 : vector<1x256xf32> to vector<8x256xf32>
    %22 = arith.mulf %20, %21 : vector<8x256xf32>
    %23 = arith.addf %7, %12 : vector<8x256xf32>
    %24 = arith.addf %17, %22 : vector<8x256xf32>
    %25 = arith.addf %23, %24 : vector<8x256xf32>
    %c0_4 = arith.constant 0 : index
    %c0_5 = arith.constant 0 : index
    %26 = vector.load %arg4[%c0_4, %c0_5] : memref<8x1xf32, #tpu.memory_space<vmem>>, vector<8x1xf32>
    %27 = vector.broadcast %26 : vector<8x1xf32> to vector<8x256xf32>
    %28 = arith.addf %25, %27 : vector<8x256xf32>
    %cst = arith.constant 0.000000e+00 : f32
    %29 = vector.broadcast %cst : f32 to vector<8x256xf32>
    %30 = arith.maximumf %28, %29 : vector<8x256xf32>
    %c0_6 = arith.constant 0 : index
    %c0_7 = arith.constant 0 : index
    %c0_8 = arith.constant 0 : index
    %31 = vector.load %arg5[%c0_6, %c0_7, %c0_8] : memref<1x8x256xf32, #tpu.memory_space<vmem>>, vector<1x8x256xf32>
    %32 = vector.shape_cast %31 : vector<1x8x256xf32> to vector<8x256xf32>
    %33 = vector.shape_cast %30 : vector<8x256xf32> to vector<1x8x256xf32>
    tpu.vector_store %arg5[%c0_6, %c0_7, %c0_8], %33 {strides = array<i32>} : memref<1x8x256xf32, #tpu.memory_space<vmem>>, vector<1x8x256xf32>,
    return
  }
  func.func @transform_0(%arg0: i32, %arg1: i32) -> (i32, i32, i32) {
    %c0_i32 = arith.constant 0 : i32
    %c0_i32_0 = arith.constant 0 : i32
    return %arg0, %c0_i32, %arg1 : i32, i32, i32
  }
  func.func @transform_1(%arg0: i32, %arg1: i32) -> (i32, i32) {
    %c0_i32 = arith.constant 0 : i32
    %c0_i32_0 = arith.constant 0 : i32
    %c0_i32_1 = arith.constant 0 : i32
    return %c0_i32, %c0_i32_0 : i32, i32
  }
  func.func @transform_2(%arg0: i32, %arg1: i32) -> (i32, i32) {
    %c0_i32 = arith.constant 0 : i32
    %c0_i32_0 = arith.constant 0 : i32
    %c0_i32_1 = arith.constant 0 : i32
    return %c0_i32, %c0_i32_0 : i32, i32
  }
  func.func @transform_3(%arg0: i32, %arg1: i32) -> (i32, i32, i32) {
    %c0_i32 = arith.constant 0 : i32
    %c0_i32_0 = arith.constant 0 : i32
    return %arg0, %c0_i32, %arg1 : i32, i32, i32
  }
}

</mosaic_0001>

<llo_original>
// kernel: dr_forward.1
$region0: #{dr_forward.1}
  #allocation0 [shape = 'u32[]', space=smem, size = 0x4, offset = 0x4, fixed_abs, tag = 'smem constant byte address 0x4 - core index']
  #allocation1 [shape = 'u32[144,128]{1,0:T(1,128)}', space=vmem, size = 0x12000, scoped, tag = 'internal scratch']
  %s0 = inlined_call_operand.vmem [shape: f32[2,4,256], index: 0, kind: input, shape index: {}]
  %s1 = inlined_call_operand.vmem [shape: f32[8,4], index: 1, kind: input, shape index: {}]
  %s2 = inlined_call_operand.vmem [shape: f32[8,1], index: 2, kind: input, shape index: {}]
  %s3 = inlined_call_operand.vmem [shape: f32[2,8,256], index: 3, kind: output, shape index: {}]
  %s4 = sld [smem:[#allocation0]]
  $region45: #{dr_forward.1} parent=0
    _
  %s6 = ssub.s32 1, %s4
  %s7 = scalar_select 0, %s6, %s4
  loop: start=0, step=1, limit=4
  $region2: #{dr_forward.1} parent=0 // loop_pre_header
    _
  $region3: #{dr_forward.1} parent=0 // loop_header
    %s9 = sphi 0, %s13
    %p10 = scmp.ge.s32.totalorder %s9, 4
    %s16 = sphi 0, %s28
    %s17 = sphi 0, %s24
    %s18 = sphi 0, %s16
    %s19 = sphi 0, %s17
    %s20 = sphi 0, %s18
    %s21 = sphi 0, %s19
    %s33 = sphi 0, %s35
    %s36 = sphi 0, %s33
    %s37 = sphi 0, %s36
    %s53 = sphi 0, %s37
    %s57 = sphi 0, %s57
    %s59 = sphi 0, %s57
    %s60 = sphi 0, %s59
    %s74 = sphi 0, %s60
    %s78 = sphi 0, %s78
    %s80 = sphi 0, %s78
    %s81 = sphi 0, %s80
    %s95 = sphi 0, %s81
    %s103 = sphi 0, %s105
    %s106 = sphi 0, %s103
    %s107 = sphi 0, %s106
    %s123 = sphi 0, %s107
  $region4: #{dr_forward.1} parent=0 // loop_header_branch
    %12 = sbr.rel (%p10) target = $region8
  $region5: #{dr_forward.1} parent=0 // loop_body
    %s14 = ssub.s32 %s9, 1
    %s15 = ssub.s32 %s9, 2
    %s22 = sadd.s32 1, %s17
    %p23 = scmp.ge.s32.totalorder %s22, 1
    %s24 = scalar_select %p23, 0, %s22
    %s25 = sadd.s32 1, %s16
    %s26 = scalar_select %p23, %s25, %s16
    %p27 = scmp.ge.s32.totalorder %s26, 2
    %s28 = scalar_select %p27, 0, %s26
    %s29 = ssub.s32 %s16, %s28
    %s30 = ssub.s32 %s17, %s24
    %s31 = sor.u32 %s29, %s30
    %p32 = scmp.eq.s32.totalorder %s31, 0
    %s34 = sadd.s32 %s33, 1
    %s35 = scalar_select %p32, %s33, %s34
    %p38 = pneg %p32
    %p39 = scmp.eq.s32.totalorder %s9, 1
    %p40 = por %p38, %p39
    %p41 = scmp.ne.s32.totalorder %s33, %s36
    %p42 = scmp.eq.s32.totalorder %s9, 0
    %p43 = por %p41, %p42
    %p44 = scmp.ne.s32.totalorder %s33, %s36
    %p45 = scmp.eq.s32.totalorder %s14, 1
    %p46 = por %p44, %p45
    %p47 = scmp.ne.s32.totalorder %s36, %s37
    %p48 = scmp.eq.s32.totalorder %s14, 0
    %p49 = por %p47, %p48
    %p50 = scmp.ne.s32.totalorder %s36, %s37
    %p51 = scmp.eq.s32.totalorder %s15, 1
    %p52 = por %p50, %p51
    %p54 = scmp.ne.s32.totalorder %s37, %s53
    %p55 = scmp.eq.s32.totalorder %s15, 0
    %p56 = por %p54, %p55
    %s58 = sadd.s32 %s57, 1
    %p61 = scmp.eq.s32.totalorder %s9, 1
    %p62 = scmp.ne.s32.totalorder %s57, %s59
    %p63 = scmp.eq.s32.totalorder %s9, 0
    %p64 = por %p62, %p63
    %p65 = scmp.ne.s32.totalorder %s57, %s59
    %p66 = scmp.eq.s32.totalorder %s14, 1
    %p67 = por %p65, %p66
    %p68 = scmp.ne.s32.totalorder %s59, %s60
    %p69 = scmp.eq.s32.totalorder %s14, 0
    %p70 = por %p68, %p69
    %p71 = scmp.ne.s32.totalorder %s59, %s60
    %p72 = scmp.eq.s32.totalorder %s15, 1
    %p73 = por %p71, %p72
    %p75 = scmp.ne.s32.totalorder %s60, %s74
    %p76 = scmp.eq.s32.totalorder %s15, 0
    %p77 = por %p75, %p76
    %s79 = sadd.s32 %s78, 1
    %p82 = scmp.eq.s32.totalorder %s9, 1
    %p83 = scmp.ne.s32.totalorder %s78, %s80
    %p84 = scmp.eq.s32.totalorder %s9, 0
    %p85 = por %p83, %p84
    %p86 = scmp.ne.s32.totalorder %s78, %s80
    %p87 = scmp.eq.s32.totalorder %s14, 1
    %p88 = por %p86, %p87
    %p89 = scmp.ne.s32.totalorder %s80, %s81
    %p90 = scmp.eq.s32.totalorder %s14, 0
    %p91 = por %p89, %p90
    %p92 = scmp.ne.s32.totalorder %s80, %s81
    %p93 = scmp.eq.s32.totalorder %s15, 1
    %p94 = por %p92, %p93
    %p96 = scmp.ne.s32.totalorder %s81, %s95
    %p97 = scmp.eq.s32.totalorder %s15, 0
    %p98 = por %p96, %p97
    %s99 = ssub.s32 %s16, %s28
    %s100 = ssub.s32 %s17, %s24
    %s101 = sor.u32 %s99, %s100
    %p102 = scmp.eq.s32.totalorder %s101, 0
    %s104 = sadd.s32 %s103, 1
    %s105 = scalar_select %p102, %s103, %s104
    %p108 = pneg %p102
    %p109 = scmp.eq.s32.totalorder %s9, 1
    %p110 = por %p108, %p109
    %p111 = scmp.ne.s32.totalorder %s103, %s106
    %p112 = scmp.eq.s32.totalorder %s9, 0
    %p113 = por %p111, %p112
    %p114 = scmp.ne.s32.totalorder %s103, %s106
    %p115 = scmp.eq.s32.totalorder %s14, 1
    %p116 = por %p114, %p115
    %p117 = scmp.ne.s32.totalorder %s106, %s107
    %p118 = scmp.eq.s32.totalorder %s14, 0
    %p119 = por %p117, %p118
    %p120 = scmp.ne.s32.totalorder %s106, %s107
    %p121 = scmp.eq.s32.totalorder %s15, 1
    %p122 = por %p120, %p121
    %p124 = scmp.ne.s32.totalorder %s107, %s123
    %p125 = scmp.eq.s32.totalorder %s15, 0
    %p126 = por %p124, %p125
    %p127 = scmp.le.s32.totalorder 1, %s9
    %p128 = scmp.lt.s32.totalorder %s9, 3
    %p129 = pnand %p127, %p128
    %p130 = pneg %p129
    // Predicated region
    $region9: #{dr_forward.1} parent=5 // pred_check
      _
    $region10: #{dr_forward.1} parent=5 // pred_check_branch
      %132 = sbr.rel (%p129) target = $region12
    $region11: #{dr_forward.1} parent=5 // pred_region
      %s133 = ssub.s32 %s9, 1
      // Predicated region
      $region13: #{dr_forward.1} parent=11 // pred_check
        %p134 = pneg %p70
      $region14: #{dr_forward.1} parent=11 // pred_check_branch
        %136 = sbr.rel (%p134) target = $region16
      $region15: #{dr_forward.1} parent=11 // pred_region
        _
      $region16: #{dr_forward.1} parent=11 // pred_fallthru
        _
      // Predicated region
      $region17: #{dr_forward.1} parent=11 // pred_check
        %p137 = pneg %p91
      $region18: #{dr_forward.1} parent=11 // pred_check_branch
        %139 = sbr.rel (%p137) target = $region20
      $region19: #{dr_forward.1} parent=11 // pred_region
        _
      $region20: #{dr_forward.1} parent=11 // pred_fallthru
        _
    $region12: #{dr_forward.1} parent=5 // pred_fallthru
      _
    %p140 = scmp.lt.s32.totalorder %s9, 2
    // Predicated region
    $region21: #{dr_forward.1} parent=5 // pred_check
      %p141 = pneg %p140
    $region22: #{dr_forward.1} parent=5 // pred_check_branch
      %143 = sbr.rel (%p141) target = $region24
    $region23: #{dr_forward.1} parent=5 // pred_region
      // Predicated region
      $region25: #{dr_forward.1} parent=23 // pred_check
        %p144 = pneg %p43
      $region26: #{dr_forward.1} parent=23 // pred_check_branch
        %146 = sbr.rel (%p144) target = $region28
      $region27: #{dr_forward.1} parent=23 // pred_region
        %s147 = smul.u32 2, %s17
        %p148 = scmp.lt.s32.totalorder %s16, 1
        %s149 = scalar_select %p148, %s16, 1
        %p150 = scmp.lt.s32.totalorder %s147, 1
        %s151 = scalar_select %p150, %s147, 1
        %s152 = smul.addr %s149, 2
        %s153 = sadd.s32 %s151, %s152
        %s154 = smul.addr %s153, 4
        %s155 = scalar_lea.vmem %s0, %s154
        %s156 = smul.u32 2, %s17
      $region28: #{dr_forward.1} parent=23 // pred_fallthru
        _
    $region24: #{dr_forward.1} parent=5 // pred_fallthru
      _
    %p157 = scmp.le.s32.totalorder 1, %s9
    %p158 = scmp.lt.s32.totalorder %s9, 3
    %p159 = pnand %p157, %p158
    %p160 = pneg %p159
    // Predicated region
    $region29: #{dr_forward.1} parent=5 // pred_check
      _
    $region30: #{dr_forward.1} parent=5 // pred_check_branch
      %162 = sbr.rel (%p159) target = $region32
    $region31: #{dr_forward.1} parent=5 // pred_region
      %s163 = ssub.s32 %s9, 1
      %s164 = smul.u32 2, %s19
      %p165 = scmp.lt.s32.totalorder %s18, 1
      %s166 = scalar_select %p165, %s18, 1
      %p167 = scmp.lt.s32.totalorder %s164, 1
      %s168 = scalar_select %p167, %s164, 1
      %s169 = smul.addr %s166, 2
      %s170 = sadd.s32 %s168, %s169
      %s171 = smul.addr %s170, 4
      %s172 = scalar_lea.vmem %s0, %s171
      %p173 = pneg %p49
      %p174 = pneg %p46
      %p175 = pneg %p70
      %p176 = pneg %p67
      %p177 = pneg %p91
      %p178 = pneg %p88
      %p179 = pneg %p119
      %p180 = pneg %p116
      %s181 = smul.u32 2, %s19
      %p182 = scmp.lt.s32.totalorder %s18, 1
      %s183 = scalar_select %p182, %s18, 1
      %p184 = scmp.lt.s32.totalorder %s181, 1
      %s185 = scalar_select %p184, %s181, 1
      %s186 = smul.addr %s183, 2
      %s187 = sadd.s32 %s185, %s186
      %s188 = smul.addr %s187, 8
      %s189 = scalar_lea.vmem %s3, %s188
      %s190 = smul.u32 2, %s19
      %p191 = scmp.lt.s32.totalorder %s18, 1
      %s192 = scalar_select %p191, %s18, 1
      %p193 = scmp.lt.s32.totalorder %s190, 1
      %s194 = scalar_select %p193, %s190, 1
      %s195 = smul.addr %s192, 2
      %s196 = sadd.s32 %s194, %s195
      %s197 = smul.addr %s196, 4
      %s198 = scalar_lea.vmem %s0, %s197
      %s199 = smul.u32 2, %s19
      %s200 = smul.u32 2, %s19
      %p201 = scmp.lt.s32.totalorder %s18, 1
      %s202 = scalar_select %p201, %s18, 1
      %p203 = scmp.lt.s32.totalorder %s200, 1
      %s204 = scalar_select %p203, %s200, 1
      %s205 = smul.addr %s202, 2
      %s206 = sadd.s32 %s204, %s205
      %s207 = smul.addr %s206, 8
      %s208 = scalar_lea.vmem %s3, %s207
      %s209 = smul.u32 2, %s19
      %v210 = vld [vmem:[%s1] sm:$0xff]
      %v211 = vld [vmem:[%s198] sm:$0xff]
      %213 = vset.pattern.permute.xlu0 0
      %214 = vperm.xlu0 %213, %v210
      %v215 = vpop.permute.xlu0 %214
      %v218 = vlaneseq
      %v219 = vshrl.u32 %v218, 7
      %v220 = vsub.s32 0, %v219
      %v221 = vrot.slane %v211, %v220
      %v222 = vlaneseq
      %v223 = vshrl.u32 %v222, 7
      %v224 = vsub.s32 4, %v223
      %v225 = vrot.slane %v211, %v224
      %v228 = vlaneseq
      %v229 = vshrl.u32 %v228, 7
      %v230 = vsub.s32 0, %v229
      %v231 = vrot.slane %v221, %v230
      %v232 = vlaneseq
      %v233 = vshrl.u32 %v232, 7
      %v234 = vsub.s32 0, %v233
      %v235 = vrot.slane %v225, %v234
      %v236 = vmul.f32 %v215, %v231
      %v237 = vmul.f32 %v215, %v235
      %238 = vset.pattern.permute.xlu0 1
      %239 = vperm.xlu0 %238, %v210
      %v240 = vpop.permute.xlu0 %239
      %v242 = vlaneseq
      %v243 = vshrl.u32 %v242, 7
      %v244 = vsub.s32 1, %v243
      %v245 = vrot.slane %v211, %v244
      %v246 = vlaneseq
      %v247 = vshrl.u32 %v246, 7
      %v248 = vsub.s32 5, %v247
      %v249 = vrot.slane %v211, %v248
      %v252 = vlaneseq
      %v253 = vshrl.u32 %v252, 7
      %v254 = vsub.s32 1, %v253
      %v255 = vrot.slane %v245, %v254
      %v256 = vlaneseq
      %v257 = vshrl.u32 %v256, 7
      %v258 = vsub.s32 1, %v257
      %v259 = vrot.slane %v249, %v258
      %v260 = vmul.f32 %v240, %v255
      %v261 = vmul.f32 %v240, %v259
      %262 = vset.pattern.permute.xlu0 2
      %263 = vperm.xlu0 %262, %v210
      %v264 = vpop.permute.xlu0 %263
      %v266 = vlaneseq
      %v267 = vshrl.u32 %v266, 7
      %v268 = vsub.s32 2, %v267
      %v269 = vrot.slane %v211, %v268
      %v270 = vlaneseq
      %v271 = vshrl.u32 %v270, 7
      %v272 = vsub.s32 6, %v271
      %v273 = vrot.slane %v211, %v272
      %v276 = vlaneseq
      %v277 = vshrl.u32 %v276, 7
      %v278 = vsub.s32 2, %v277
      %v279 = vrot.slane %v269, %v278
      %v280 = vlaneseq
      %v281 = vshrl.u32 %v280, 7
      %v282 = vsub.s32 2, %v281
      %v283 = vrot.slane %v273, %v282
      %v284 = vmul.f32 %v264, %v279
      %v285 = vmul.f32 %v264, %v283
      %286 = vset.pattern.permute.xlu0 3
      %287 = vperm.xlu0 %286, %v210
      %v288 = vpop.permute.xlu0 %287
      %v290 = vlaneseq
      %v291 = vshrl.u32 %v290, 7
      %v292 = vsub.s32 3, %v291
      %v293 = vrot.slane %v211, %v292
      %v294 = vlaneseq
      %v295 = vshrl.u32 %v294, 7
      %v296 = vsub.s32 7, %v295
      %v297 = vrot.slane %v211, %v296
      %v300 = vlaneseq
      %v301 = vshrl.u32 %v300, 7
      %v302 = vsub.s32 3, %v301
      %v303 = vrot.slane %v293, %v302
      %v304 = vlaneseq
      %v305 = vshrl.u32 %v304, 7
      %v306 = vsub.s32 3, %v305
      %v307 = vrot.slane %v297, %v306
      %v308 = vmul.f32 %v288, %v303
      %v309 = vmul.f32 %v288, %v307
      %v310 = vadd.f32 %v236, %v260
      %v311 = vadd.f32 %v237, %v261
      %v312 = vadd.f32 %v284, %v308
      %v313 = vadd.f32 %v285, %v309
      %v314 = vadd.f32 %v310, %v312
      %v315 = vadd.f32 %v311, %v313
      %v316 = vld [vmem:[%s2] sm:$0xff]
      %318 = vset.pattern.permute.xlu0 0
      %319 = vperm.xlu0 %318, %v316
      %v320 = vpop.permute.xlu0 %319
      %v322 = vadd.f32 %v314, %v320
      %v323 = vadd.f32 %v315, %v320
      %v324 = vmax.f32 %v322, 0.0
      %v325 = vmax.f32 %v323, 0.0
      %326 = vst [vmem:[%s208] sm:$0xff] %v324
      %327 = vst [vmem:[%s208 + $0x8] sm:$0xff] %v325
      %s328 = smul.u32 2, %s19
      %p329 = scmp.lt.s32.totalorder %s18, 1
      %s330 = scalar_select %p329, %s18, 1
      %p331 = scmp.lt.s32.totalorder %s328, 1
      %s332 = scalar_select %p331, %s328, 1
      %s333 = smul.addr %s330, 2
      %s334 = sadd.s32 %s332, %s333
      %s335 = smul.addr %s334, 8
      %s336 = scalar_lea.vmem %s3, %s335
      // Predicated region
      $region33: #{dr_forward.1} parent=31 // pred_check
        %p337 = pneg %p116
      $region34: #{dr_forward.1} parent=31 // pred_check_branch
        %339 = sbr.rel (%p337) target = $region36
      $region35: #{dr_forward.1} parent=31 // pred_region
        %s340 = smul.u32 2, %s19
      $region36: #{dr_forward.1} parent=31 // pred_fallthru
        _
    $region32: #{dr_forward.1} parent=5 // pred_fallthru
      _
    %p341 = scmp.le.s32.totalorder 2, %s9
    // Predicated region
    $region37: #{dr_forward.1} parent=5 // pred_check
      %p342 = pneg %p341
    $region38: #{dr_forward.1} parent=5 // pred_check_branch
      %344 = sbr.rel (%p342) target = $region40
    $region39: #{dr_forward.1} parent=5 // pred_region
      %s345 = ssub.s32 %s9, 2
      // Predicated region
      $region41: #{dr_forward.1} parent=39 // pred_check
        %p346 = pneg %p122
      $region42: #{dr_forward.1} parent=39 // pred_check_branch
        %348 = sbr.rel (%p346) target = $region44
      $region43: #{dr_forward.1} parent=39 // pred_region
        %s349 = smul.u32 2, %s21
        %p350 = scmp.lt.s32.totalorder %s20, 1
        %s351 = scalar_select %p350, %s20, 1
        %p352 = scmp.lt.s32.totalorder %s349, 1
        %s353 = scalar_select %p352, %s349, 1
        %s354 = smul.addr %s351, 2
        %s355 = sadd.s32 %s353, %s354
        %s356 = smul.addr %s355, 8
        %s357 = scalar_lea.vmem %s3, %s356
      $region44: #{dr_forward.1} parent=39 // pred_fallthru
        _
    $region40: #{dr_forward.1} parent=5 // pred_fallthru
      _
  $region6: #{dr_forward.1} parent=0 // loop_footer
    %s13 = sadd.s32 1, %s9
  $region7: #{dr_forward.1} parent=0 // loop_footer_branch
    %8 = sbr.rel target = $region3
  $region8: #{dr_forward.1} parent=0 // loop_exit
    _

</llo_original>
